<compile_context>
chip_gen: v6e
topology: v6e:2x2x1
jax: 0.10.0
libtpu: 0.0.40
codegen_flags: <defaults>
</compile_context>

<pallas_src>
import functools

import jax
import jax.numpy as jnp
import numpy as np
from jax import lax
from jax.experimental import pallas as pl
from jax.experimental.pallas import tpu as pltpu

OUT_W = 110   # fixed alpha width taken from the PyTorch module


def _round_up(x, m):
    return ((x + m - 1) // m) * m


def _auto_batch_block(batch):
    """Small batch block: aim for >= 4 grid steps, cap at 8, divide the batch."""
    bb = max(1, min(8, (batch + 3) // 4))
    while batch % bb:
        bb -= 1
    return bb


def _edge_att_kernel(nf_ref, len_ref, w_ref, out_ref, *, wp, wf, out_w):
    """One grid step = one block of `bb` batch elements, fully in VMEM."""
    x = nf_ref[...]                      # (bb, Lj, D) compute dtype (bf16/f32)
    w = w_ref[...]                       # (D, D)      compute dtype
    last = len_ref[...] - 1              # (bb, 1, 1)  i32: cur_len - 1

    bb, Lj, D = x.shape
    L = out_ref.shape[1]                 # module's max_len (Lj = round_up(L, 8))

    # att[b, k, :] = W @ x[b, k]  ->  one tall (bb*Lj, D) MXU matmul,
    # transpose-free (contract x's feature dim with W's columns).  Lj % 8 == 0,
    # so the reshapes are pure layout views.
    x2 = x.reshape(bb * Lj, D)
    att = lax.dot_general(
        x2, w,
        dimension_numbers=(((1,), (1,)), ((), ())),
        preferred_element_type=jnp.float32,
    ).reshape(bb, Lj, D).astype(x.dtype)

    # scores[b, j, k] = x[b, j] . att[b, k] = x_j^T W x_k (batched MXU matmul,
    # f32 accumulate).
    scores = jnp.einsum("bje,bke->bjk", x, att,
                        preferred_element_type=jnp.float32)   # (bb, Lj, Lj) f32

    # Factorized mask: batch-independent window band + per-batch length masks.
    j_idx = lax.broadcasted_iota(jnp.int32, (1, Lj, 1), 1)
    k_idx = lax.broadcasted_iota(jnp.int32, (1, 1, Lj), 2)
    diff = k_idx - j_idx                                       # (1, Lj, Lj)
    band = (diff >= -wp) & (diff <= wf)
    mask = band & (j_idx <= last) & (k_idx <= last)            # (bb, Lj, Lj)

    neg = jnp.float32(-1e30)
    masked = jnp.where(mask, scores, neg)
    row_max = jnp.max(masked, axis=-1, keepdims=True)
    # exp on already-masked values: no spurious inf; this `where` is
    # load-bearing — it makes fully-masked (padded) rows come out all-zero.
    p = jnp.where(mask, jnp.exp(masked - row_max), 0.0)
    denom = jnp.sum(p, axis=-1, keepdims=True)

    # EUP approximate reciprocal (off the VALU path) + one Newton step to
    # recover ~full f32 precision; clamp keeps fully-masked rows finite.
    d = jnp.maximum(denom, jnp.float32(1e-30))
    r = pl.reciprocal(d, approx=True)
    r = r * (jnp.float32(2.0) - d * r)
    probs = jnp.where(denom > 0.0, p * r, 0.0)                 # (bb, Lj, Lj) f32

    # Store the module-shaped (bb, L, out_w) tile.  Valid columns k < cur_len
    # <= L are inside probs[..., :min(Lj, out_w)]; everything else is zero.
    kw = min(Lj, out_w)
    if kw < out_w:
        out_ref[...] = jnp.zeros(out_ref.shape, jnp.float32)
        out_ref[:, :, :kw] = probs[:, :L, :kw]
    else:
        out_ref[...] = probs[:, :L, :out_w]


def edge_att_forward(node_features, text_len, weight, wp, wf, *,
                     batch_block=None, compute_dtype=jnp.bfloat16,
                     vmem_limit_bytes=48 * 1024 * 1024):
    """Returns alpha as a single (B, L, 110) f32 array (module returns it per batch)."""
    B, L, D = node_features.shape
    assert L <= OUT_W, "module assumes max_len <= 110"
    assert weight.shape == (D, D)

    if batch_block is None:
        bb = _auto_batch_block(B)
    else:
        bb = int(batch_block)
        assert B % bb == 0, "batch_block must divide the batch size"

    Lj = _round_up(L, 8)   # sublane-align the utterance axis only (<= +7 rows)

    nf = node_features.astype(compute_dtype)       # ship bf16 -> half the DMA
    if Lj != L:
        nf = jnp.pad(nf, ((0, 0), (0, Lj - L), (0, 0)))
    w = weight.astype(compute_dtype)
    lens = text_len.astype(jnp.int32).reshape(B, 1, 1)

    kernel = functools.partial(_edge_att_kernel, wp=int(wp), wf=int(wf),
                               out_w=OUT_W)
    return pl.pallas_call(
        kernel,
        out_shape=jax.ShapeDtypeStruct((B, L, OUT_W), jnp.float32),
        grid_spec=pltpu.PrefetchScalarGridSpec(
            num_scalar_prefetch=0,
            grid=(B // bb,),
            in_specs=[
                pl.BlockSpec((bb, Lj, D), lambda i: (i, 0, 0)),
                pl.BlockSpec((bb, 1, 1), lambda i: (i, 0, 0)),
                # Constant index_map: Pallas DMAs W once per core and skips the
                # re-fetch on later steps; only 2x D*D VMEM is reserved.
                pl.BlockSpec((D, D), lambda i: (0, 0)),
            ],
            out_specs=pl.BlockSpec((bb, L, OUT_W), lambda i: (i, 0, 0)),
        ),
        # Batch-block axis is independent -> parallel (shards across v7x's two
        # TensorCores once grid >= 2; harmless on v5e/v6e).
        compiler_params=pltpu.CompilerParams(
            dimension_semantics=("parallel",),
            vmem_limit_bytes=vmem_limit_bytes,
        ),
    )(nf, lens, w)


def _reference(nf, lens, W, wp, wf):
    B, L, D = nf.shape
    att = nf @ W.T
    outs = []
    for i in range(B):
        cur = int(lens[i])
        alpha = np.zeros((L, OUT_W), np.float32)
        for j in range(cur):
            s = max(j - wp, 0)
            e = min(j + wf, cur - 1)
            sc = att[i, s:e + 1] @ nf[i, j]
            ex = np.exp(sc - sc.max())
            alpha[j, s:e + 1] = ex / ex.sum()
        outs.append(alpha)
    return np.stack(outs)


if __name__ == "__main__":
    # Small shapes consistent with the module: batch=2, max_len=8, g_dim=32.
    B, L, D = 2, 8, 32
    wp, wf = 2, 2

    key = jax.random.PRNGKey(0)
    k_nf, k_w = jax.random.split(key)
    node_features = jax.random.normal(k_nf, (B, L, D), jnp.float32)
    # Deterministic init matching nn.Parameter(zeros).normal_(0, 2/(g+g)).
    std = 2.0 / (D + D)
    weight = std * jax.random.normal(k_w, (D, D), jnp.float32)
    text_len = jnp.array([8, 5], jnp.int32)

    ref = _reference(np.asarray(node_features), np.asarray(text_len),
                     np.asarray(weight), wp, wf)

    # Exact-semantics path (f32 MXU) — tight tolerance against the reference.
    alpha_f32 = edge_att_forward(node_features, text_len, weight, wp, wf,
                                 compute_dtype=jnp.float32)
    alpha_f32 = jax.block_until_ready(alpha_f32)
    np.testing.assert_allclose(np.asarray(alpha_f32), ref, rtol=1e-4, atol=1e-4)

    # Default fast path (bf16 MXU operands, f32 accumulate + f32 softmax).
    alpha_bf16 = edge_att_forward(node_features, text_len, weight, wp, wf)
    alpha_bf16 = jax.block_until_ready(alpha_bf16)
    np.testing.assert_allclose(np.asarray(alpha_bf16), ref, rtol=2e-2, atol=2e-2)

    print("KERNEL_OK")
</pallas_src>

<mosaic_0001>
module attributes {stable_mosaic.version = 11 : i64} {
  func.func @_edge_att_kernel(%arg0: i32, %arg1: memref<1x8x32xf32, #tpu.memory_space<vmem>>, %arg2: memref<1x1x1xi32, #tpu.memory_space<vmem>>, %arg3: memref<32x32xf32, #tpu.memory_space<vmem>>, %arg4: memref<1x8x110xf32, #tpu.memory_space<vmem>>) attributes {dimension_semantics = [#tpu.dimension_semantics<parallel>], iteration_bounds = array<i64: 2>, scalar_prefetch = 0 : i64, scratch_operands = 0 : i64, tpu.core_type = #tpu.core_type<tc>, window_params = [{transform_indices = @transform_0, window_bounds = array<i64: 1, 8, 32>}, {transform_indices = @transform_1, window_bounds = array<i64: 1, 1, 1>}, {pipeline_mode = #tpu.pipeline_mode<synchronous>, transform_indices = @transform_2, window_bounds = array<i64: 32, 32>}, {transform_indices = @transform_3, window_bounds = array<i64: 1, 8, 110>}]} {
    %c0 = arith.constant 0 : index
    %c0_0 = arith.constant 0 : index
    %c0_1 = arith.constant 0 : index
    %0 = vector.load %arg1[%c0, %c0_0, %c0_1] : memref<1x8x32xf32, #tpu.memory_space<vmem>>, vector<1x8x32xf32>
    %c0_2 = arith.constant 0 : index
    %c0_3 = arith.constant 0 : index
    %1 = vector.load %arg3[%c0_2, %c0_3] : memref<32x32xf32, #tpu.memory_space<vmem>>, vector<32x32xf32>
    %c0_4 = arith.constant 0 : index
    %c0_5 = arith.constant 0 : index
    %c0_6 = arith.constant 0 : index
    %2 = vector.load %arg2[%c0_4, %c0_5, %c0_6] : memref<1x1x1xi32, #tpu.memory_space<vmem>>, vector<1x1x1xi32>
    %c1_i32 = arith.constant 1 : i32
    %3 = vector.broadcast %c1_i32 : i32 to vector<1x1x1xi32>
    %4 = arith.subi %2, %3 : vector<1x1x1xi32>
    %5 = vector.shape_cast %0 : vector<1x8x32xf32> to vector<8x32xf32>
    %cst = arith.constant dense<0.000000e+00> : vector<8x32xf32>
    %6 = tpu.matmul %5, %1, %cst {dimension_numbers = #tpu.dot_dimension_numbers<[1], [1], [0], [0], [0, 0, 1, 0], [], []>} : vector<8x32xf32>, vector<32x32xf32>, vector<8x32xf32> -> vector<8x32xf32>
    %7 = vector.shape_cast %6 : vector<8x32xf32> to vector<1x8x32xf32>
    "tpu.trace_start"() <{level = 10 : i32, message = "bje,bke->bjk"}> : () -> ()
    %cst_7 = arith.constant dense<0.000000e+00> : vector<1x8x8xf32>
    %8 = tpu.matmul %0, %7, %cst_7 {dimension_numbers = #tpu.dot_dimension_numbers<[2], [2], [1], [1], [0, 0, 0, 1, 1, 1], [0], [0]>} : vector<1x8x32xf32>, vector<1x8x32xf32>, vector<1x8x8xf32> -> vector<1x8x8xf32>
    "tpu.trace_stop"() : () -> ()
    %9 = tpu.iota {dimensions = array<i32: 1>} : vector<1x8x1xi32>
    %10 = tpu.iota {dimensions = array<i32: 2>} : vector<1x1x8xi32>
    %11 = vector.broadcast %10 : vector<1x1x8xi32> to vector<1x8x8xi32>
    %12 = vector.broadcast %9 : vector<1x8x1xi32> to vector<1x8x8xi32>
    %13 = arith.subi %11, %12 : vector<1x8x8xi32>
    %c-2_i32 = arith.constant -2 : i32
    %14 = vector.broadcast %c-2_i32 : i32 to vector<1x8x8xi32>
    %15 = arith.cmpi sge, %13, %14 : vector<1x8x8xi32>
    %c2_i32 = arith.constant 2 : i32
    %16 = vector.broadcast %c2_i32 : i32 to vector<1x8x8xi32>
    %17 = arith.cmpi sle, %13, %16 : vector<1x8x8xi32>
    %18 = arith.andi %15, %17 : vector<1x8x8xi1>
    %19 = vector.broadcast %4 : vector<1x1x1xi32> to vector<1x8x1xi32>
    %20 = arith.cmpi sle, %9, %19 : vector<1x8x1xi32>
    %21 = vector.broadcast %20 : vector<1x8x1xi1> to vector<1x8x8xi1>
    %22 = arith.andi %18, %21 : vector<1x8x8xi1>
    %23 = vector.broadcast %4 : vector<1x1x1xi32> to vector<1x1x8xi32>
    %24 = arith.cmpi sle, %10, %23 : vector<1x1x8xi32>
    %25 = vector.broadcast %24 : vector<1x1x8xi1> to vector<1x8x8xi1>
    %26 = arith.andi %22, %25 : vector<1x8x8xi1>
    %cst_8 = arith.constant -1.000000e+30 : f32
    %27 = vector.broadcast %cst_8 : f32 to vector<1x8x8xf32>
    %28 = arith.select %26, %8, %27 : vector<1x8x8xi1>, vector<1x8x8xf32>
    %cst_9 = arith.constant dense<0xFF800000> : vector<1x8xf32>
    %29 = vector.multi_reduction <maximumf>, %28, %cst_9 [2] : vector<1x8x8xf32> to vector<1x8xf32>
    %30 = vector.shape_cast %29 : vector<1x8xf32> to vector<1x8x1xf32>
    %31 = vector.broadcast %30 : vector<1x8x1xf32> to vector<1x8x8xf32>
    %32 = arith.subf %28, %31 : vector<1x8x8xf32>
    %33 = math.exp %32 : vector<1x8x8xf32>
    %cst_10 = arith.constant 0.000000e+00 : f32
    %34 = vector.broadcast %cst_10 : f32 to vector<1x8x8xf32>
    %35 = arith.select %26, %33, %34 : vector<1x8x8xi1>, vector<1x8x8xf32>
    %cst_11 = arith.constant dense<0.000000e+00> : vector<1x8xf32>
    %36 = vector.multi_reduction <add>, %35, %cst_11 [2] : vector<1x8x8xf32> to vector<1x8xf32>
    %37 = vector.shape_cast %36 : vector<1x8xf32> to vector<1x8x1xf32>
    %cst_12 = arith.constant 1.000000e-30 : f32
    %38 = vector.broadcast %cst_12 : f32 to vector<1x8x1xf32>
    %39 = arith.maximumf %37, %38 : vector<1x8x1xf32>
    %40 = tpu.reciprocal %39 {approx = true} : vector<1x8x1xf32> -> vector<1x8x1xf32>
    %41 = arith.mulf %39, %40 : vector<1x8x1xf32>
    %cst_13 = arith.constant 2.000000e+00 : f32
    %42 = vector.broadcast %cst_13 : f32 to vector<1x8x1xf32>
    %43 = arith.subf %42, %41 : vector<1x8x1xf32>
    %44 = arith.mulf %40, %43 : vector<1x8x1xf32>
    %cst_14 = arith.constant 0.000000e+00 : f32
    %45 = vector.broadcast %cst_14 : f32 to vector<1x8x1xf32>
    %46 = arith.cmpf ogt, %37, %45 : vector<1x8x1xf32>
    %47 = vector.broadcast %44 : vector<1x8x1xf32> to vector<1x8x8xf32>
    %48 = arith.mulf %35, %47 : vector<1x8x8xf32>
    %cst_15 = arith.constant 0.000000e+00 : f32
    %49 = vector.shape_cast %46 : vector<1x8x1xi1> to vector<1x8x1xi1>
    %50 = vector.broadcast %49 : vector<1x8x1xi1> to vector<1x8x8xi1>
    %51 = vector.broadcast %cst_15 : f32 to vector<1x8x8xf32>
    %52 = arith.select %50, %48, %51 : vector<1x8x8xi1>, vector<1x8x8xf32>
    %cst_16 = arith.constant 0.000000e+00 : f32
    %53 = vector.broadcast %cst_16 : f32 to vector<1x8x110xf32>
    %c0_17 = arith.constant 0 : index
    %c0_18 = arith.constant 0 : index
    %c0_19 = arith.constant 0 : index
    %54 = vector.load %arg4[%c0_17, %c0_18, %c0_19] : memref<1x8x110xf32, #tpu.memory_space<vmem>>, vector<1x8x110xf32>
    tpu.vector_store %arg4[%c0_17, %c0_18, %c0_19], %53 {strides = array<i32>} : memref<1x8x110xf32, #tpu.memory_space<vmem>>, vector<1x8x110xf32>,
    %c0_20 = arith.constant 0 : index
    %c0_21 = arith.constant 0 : index
    %c0_22 = arith.constant 0 : index
    %55 = vector.load %arg4[%c0_20, %c0_21, %c0_22] : memref<1x8x110xf32, #tpu.memory_space<vmem>>, vector<1x8x8xf32>
    tpu.vector_store %arg4[%c0_20, %c0_21, %c0_22], %52 {strides = array<i32>} : memref<1x8x110xf32, #tpu.memory_space<vmem>>, vector<1x8x8xf32>,
    return
  }
  func.func @transform_0(%arg0: i32) -> (i32, i32, i32) {
    %c0_i32 = arith.constant 0 : i32
    %c0_i32_0 = arith.constant 0 : i32
    %c0_i32_1 = arith.constant 0 : i32
    return %arg0, %c0_i32, %c0_i32_0 : i32, i32, i32
  }
  func.func @transform_1(%arg0: i32) -> (i32, i32, i32) {
    %c0_i32 = arith.constant 0 : i32
    %c0_i32_0 = arith.constant 0 : i32
    %c0_i32_1 = arith.constant 0 : i32
    return %arg0, %c0_i32, %c0_i32_0 : i32, i32, i32
  }
  func.func @transform_2(%arg0: i32) -> (i32, i32) {
    %c0_i32 = arith.constant 0 : i32
    %c0_i32_0 = arith.constant 0 : i32
    %c0_i32_1 = arith.constant 0 : i32
    return %c0_i32, %c0_i32_0 : i32, i32
  }
  func.func @transform_3(%arg0: i32) -> (i32, i32, i32) {
    %c0_i32 = arith.constant 0 : i32
    %c0_i32_0 = arith.constant 0 : i32
    %c0_i32_1 = arith.constant 0 : i32
    return %arg0, %c0_i32, %c0_i32_0 : i32, i32, i32
  }
}

</mosaic_0001>

<llo_original>
// kernel: tpu_custom_call.1
$region0: #{tpu_custom_call.1}
  #allocation0 [shape = 'u32[]', space=smem, size = 0x4, offset = 0x4, fixed_abs, tag = 'smem constant byte address 0x4 - core index']
  #allocation1 [shape = 'u32[144,128]{1,0:T(1,128)}', space=vmem, size = 0x12000, scoped, tag = 'internal scratch']
  %s0 = inlined_call_operand.hbm [shape: f32[2,8,32], index: 0, kind: input, shape index: {}]
  %s1 = inlined_call_operand.vmem [shape: s32[2,1,1], index: 1, kind: input, shape index: {}]
  %s2 = inlined_call_operand.hbm [shape: f32[32,32], index: 2, kind: input, shape index: {}]
  %s3 = inlined_call_operand.hbm [shape: f32[2,8,110], index: 3, kind: output, shape index: {}]
  %s4 = sld [smem:[#allocation0]]
  $region53: #{tpu_custom_call.1} parent=0
    _
  %s6 = ssub.s32 1, %s4
  %s7 = scalar_select 0, %s6, %s4
  $region1: #{tpu_custom_call.1} parent=0
    #allocation2 [shape = 'u8[8192]{0}', space=vmem, size = 0x2000, scoped, tag = 'input window, operand 0']
    #allocation3 [shape = 's32[2]{0}', space=sflag, size = 0x8, scoped, tag = 'scoped memory for tpu_custom_call.1']
    #allocation4 [shape = 's32[2]{0}', space=sflag, size = 0x8, scoped, tag = 'scoped memory for tpu_custom_call.1']
    #allocation5 [shape = 'u8[16384]{0}', space=vmem, size = 0x4000, scoped, tag = 'input window, operand 2, single buffered']
    #allocation6 [shape = 's32[1]{0}', space=sflag, size = 0x4, scoped, tag = 'scoped memory for tpu_custom_call.1']
    #allocation7 [shape = 'u8[8192]{0}', space=vmem, size = 0x2000, scoped, tag = 'output window, operand 0']
    %8 = vsyncpa [#allocation3], 0
    %s9 = scalar_lea.sflag [#allocation3], 1
    %10 = vsyncpa %s9, 0
    %11 = vsyncpa [#allocation6], 0
    %12 = vsyncpa [#allocation4], 0
    %s13 = scalar_lea.sflag [#allocation4], 1
    %14 = vsyncpa %s13, 0
    loop: start=0, step=1, limit=4
    $region2: #{tpu_custom_call.1} parent=1 // loop_pre_header
      _
    $region3: #{tpu_custom_call.1} parent=1 // loop_header
      %s16 = sphi 0, %s20
      %p17 = scmp.ge.s32.totalorder %s16, 4
      %s26 = sphi 0, %s28
      %s29 = sphi 0, %s26
      %s30 = sphi 0, %s29
      %s46 = sphi 0, %s30
      %s52 = sphi 0, %s54
      %s55 = sphi 0, %s52
      %s56 = sphi 0, %s55
      %s72 = sphi 0, %s56
      %s76 = sphi 0, %s76
      %s78 = sphi 0, %s76
      %s79 = sphi 0, %s78
      %s93 = sphi 0, %s79
      %s99 = sphi 0, %s101
      %s102 = sphi 0, %s99
      %s103 = sphi 0, %s102
      %s119 = sphi 0, %s103
    $region4: #{tpu_custom_call.1} parent=1 // loop_header_branch
      %19 = sbr.rel (%p17) target = $region8
    $region5: #{tpu_custom_call.1} parent=1 // loop_body
      %s21 = ssub.s32 %s16, 1
      %s22 = ssub.s32 %s16, 2
      %s23 = sadd.s32 %s16, 1
      %s24 = ssub.s32 %s16, %s23
      %p25 = scmp.eq.s32.totalorder %s24, 0
      %s27 = sadd.s32 %s26, 1
      %s28 = scalar_select %p25, %s26, %s27
      %p31 = pneg %p25
      %p32 = scmp.eq.s32.totalorder %s16, 1
      %p33 = por %p31, %p32
      %p34 = scmp.ne.s32.totalorder %s26, %s29
      %p35 = scmp.eq.s32.totalorder %s16, 0
      %p36 = por %p34, %p35
      %p37 = scmp.ne.s32.totalorder %s26, %s29
      %p38 = scmp.eq.s32.totalorder %s21, 1
      %p39 = por %p37, %p38
      %p40 = scmp.ne.s32.totalorder %s29, %s30
      %p41 = scmp.eq.s32.totalorder %s21, 0
      %p42 = por %p40, %p41
      %p43 = scmp.ne.s32.totalorder %s29, %s30
      %p44 = scmp.eq.s32.totalorder %s22, 1
      %p45 = por %p43, %p44
      %p47 = scmp.ne.s32.totalorder %s30, %s46
      %p48 = scmp.eq.s32.totalorder %s22, 0
      %p49 = por %p47, %p48
      %s50 = ssub.s32 %s16, %s23
      %p51 = scmp.eq.s32.totalorder %s50, 0
      %s53 = sadd.s32 %s52, 1
      %s54 = scalar_select %p51, %s52, %s53
      %p57 = pneg %p51
      %p58 = scmp.eq.s32.totalorder %s16, 1
      %p59 = por %p57, %p58
      %p60 = scmp.ne.s32.totalorder %s52, %s55
      %p61 = scmp.eq.s32.totalorder %s16, 0
      %p62 = por %p60, %p61
      %p63 = scmp.ne.s32.totalorder %s52, %s55
      %p64 = scmp.eq.s32.totalorder %s21, 1
      %p65 = por %p63, %p64
      %p66 = scmp.ne.s32.totalorder %s55, %s56
      %p67 = scmp.eq.s32.totalorder %s21, 0
      %p68 = por %p66, %p67
      %p69 = scmp.ne.s32.totalorder %s55, %s56
      %p70 = scmp.eq.s32.totalorder %s22, 1
      %p71 = por %p69, %p70
      %p73 = scmp.ne.s32.totalorder %s56, %s72
      %p74 = scmp.eq.s32.totalorder %s22, 0
      %p75 = por %p73, %p74
      %s77 = sadd.s32 %s76, 1
      %p80 = scmp.eq.s32.totalorder %s16, 1
      %p81 = scmp.ne.s32.totalorder %s76, %s78
      %p82 = scmp.eq.s32.totalorder %s16, 0
      %p83 = por %p81, %p82
      %p84 = scmp.ne.s32.totalorder %s76, %s78
      %p85 = scmp.eq.s32.totalorder %s21, 1
      %p86 = por %p84, %p85
      %p87 = scmp.ne.s32.totalorder %s78, %s79
      %p88 = scmp.eq.s32.totalorder %s21, 0
      %p89 = por %p87, %p88
      %p90 = scmp.ne.s32.totalorder %s78, %s79
      %p91 = scmp.eq.s32.totalorder %s22, 1
      %p92 = por %p90, %p91
      %p94 = scmp.ne.s32.totalorder %s79, %s93
      %p95 = scmp.eq.s32.totalorder %s22, 0
      %p96 = por %p94, %p95
      %s97 = ssub.s32 %s16, %s23
      %p98 = scmp.eq.s32.totalorder %s97, 0
      %s100 = sadd.s32 %s99, 1
      %s101 = scalar_select %p98, %s99, %s100
      %p104 = pneg %p98
      %p105 = scmp.eq.s32.totalorder %s16, 1
      %p106 = por %p104, %p105
      %p107 = scmp.ne.s32.totalorder %s99, %s102
      %p108 = scmp.eq.s32.totalorder %s16, 0
      %p109 = por %p107, %p108
      %p110 = scmp.ne.s32.totalorder %s99, %s102
      %p111 = scmp.eq.s32.totalorder %s21, 1
      %p112 = por %p110, %p111
      %p113 = scmp.ne.s32.totalorder %s102, %s103
      %p114 = scmp.eq.s32.totalorder %s21, 0
      %p115 = por %p113, %p114
      %p116 = scmp.ne.s32.totalorder %s102, %s103
      %p117 = scmp.eq.s32.totalorder %s22, 1
      %p118 = por %p116, %p117
      %p120 = scmp.ne.s32.totalorder %s103, %s119
      %p121 = scmp.eq.s32.totalorder %s22, 0
      %p122 = por %p120, %p121
      %p123 = scmp.le.s32.totalorder 1, %s16
      %p124 = scmp.lt.s32.totalorder %s16, 3
      %p125 = pnand %p123, %p124
      %p126 = pneg %p125
      // Predicated region
      $region9: #{tpu_custom_call.1} parent=5 // pred_check
        _
      $region10: #{tpu_custom_call.1} parent=5 // pred_check_branch
        %128 = sbr.rel (%p125) target = $region12
      $region11: #{tpu_custom_call.1} parent=5 // pred_region
        %s129 = ssub.s32 %s16, 1
        // Predicated region
        $region13: #{tpu_custom_call.1} parent=11 // pred_check
          %p130 = pneg %p89
        $region14: #{tpu_custom_call.1} parent=11 // pred_check_branch
          %132 = sbr.rel (%p130) target = $region16
        $region15: #{tpu_custom_call.1} parent=11 // pred_region
          %s134 = ssub.s32 512, 512
          %135 = vsyncadd [#allocation6], %s134
          %s136 = sshll.u32 [#allocation5], 4
          %s137 = int_to_ptr.vmem [resolvable:$true] %s136
          %142 = dma.hbm_to_vmem [thread:$0]  %s2, 512, %s137, [#allocation6], 128, 128, 8
        $region16: #{tpu_custom_call.1} parent=11 // pred_fallthru
          _
      $region12: #{tpu_custom_call.1} parent=5 // pred_fallthru
        _
      %p143 = scmp.lt.s32.totalorder %s16, 2
      // Predicated region
      $region17: #{tpu_custom_call.1} parent=5 // pred_check
        %p144 = pneg %p143
      $region18: #{tpu_custom_call.1} parent=5 // pred_check_branch
        %146 = sbr.rel (%p144) target = $region20
      $region19: #{tpu_custom_call.1} parent=5 // pred_region
        // Predicated region
        $region21: #{tpu_custom_call.1} parent=19 // pred_check
          %p147 = pneg %p36
        $region22: #{tpu_custom_call.1} parent=19 // pred_check_branch
          %149 = sbr.rel (%p147) target = $region24
        $region23: #{tpu_custom_call.1} parent=19 // pred_region
          %s150 = sand.u32 %s26, 1
          %s151 = scalar_lea.sflag [#allocation3], %s150
          %s152 = sand.u32 %s26, 1
          %s153 = smul.addr %s152, 8
          %s154 = scalar_lea.vmem [#allocation2], %s153
          %s156 = ssub.s32 128, 128
          %157 = vsyncadd %s151, %s156
          %s158 = smul.addr %s16, 128
          %s159 = scalar_lea.hbm %s0, %s158
          %s161 = sshll.u32 %s154, 4
          %s162 = int_to_ptr.vmem [resolvable:$true] %s161
          %164 = dma.hbm_to_vmem [thread:$0]  %s159, 128, %s162, %s151
        $region24: #{tpu_custom_call.1} parent=19 // pred_fallthru
          _
        // Predicated region
        $region25: #{tpu_custom_call.1} parent=19 // pred_check
          %p165 = pneg %p62
        $region26: #{tpu_custom_call.1} parent=19 // pred_check_branch
          %167 = sbr.rel (%p165) target = $region28
        $region27: #{tpu_custom_call.1} parent=19 // pred_region
          %p168 = scmp.lt.s32.totalorder %s16, 1
          %s169 = scalar_select %p168, %s16, 1
          %s170 = scalar_lea.vmem %s1, %s169
        $region28: #{tpu_custom_call.1} parent=19 // pred_fallthru
          _
      $region20: #{tpu_custom_call.1} parent=5 // pred_fallthru
        _
      %p171 = scmp.le.s32.totalorder 1, %s16
      %p172 = scmp.lt.s32.totalorder %s16, 3
      %p173 = pnand %p171, %p172
      %p174 = pneg %p173
      // Predicated region
      $region29: #{tpu_custom_call.1} parent=5 // pred_check
        _
      $region30: #{tpu_custom_call.1} parent=5 // pred_check_branch
        %176 = sbr.rel (%p173) target = $region32
      $region31: #{tpu_custom_call.1} parent=5 // pred_region
        %s177 = ssub.s32 %s16, 1
        %s178 = sand.u32 %s29, 1
        %s179 = scalar_lea.sflag [#allocation3], %s178
        %s180 = sand.u32 %s29, 1
        %s181 = smul.addr %s180, 8
        %s182 = scalar_lea.vmem [#allocation2], %s181
        // Predicated region
        $region33: #{tpu_custom_call.1} parent=31 // pred_check
          %p183 = pneg %p42
        $region34: #{tpu_custom_call.1} parent=31 // pred_check_branch
          %185 = sbr.rel (%p183) target = $region36
        $region35: #{tpu_custom_call.1} parent=31 // pred_region
          %186 = dma.done %s179, 128
        $region36: #{tpu_custom_call.1} parent=31 // pred_fallthru
          _
        // Predicated region
        $region37: #{tpu_custom_call.1} parent=31 // pred_check
          %p187 = pneg %p89
        $region38: #{tpu_custom_call.1} parent=31 // pred_check_branch
          %189 = sbr.rel (%p187) target = $region40
        $region39: #{tpu_custom_call.1} parent=31 // pred_region
          %190 = dma.done [#allocation6], 512
        $region40: #{tpu_custom_call.1} parent=31 // pred_fallthru
          _
        %s191 = sand.u32 %s29, 1
        %s192 = scalar_lea.sflag [#allocation3], %s191
        %s193 = sand.u32 %s29, 1
        %s194 = smul.addr %s193, 8
        %s195 = scalar_lea.vmem [#allocation2], %s194
        %p196 = pneg %p42
        %p197 = pneg %p39
        %p198 = scmp.lt.s32.totalorder %s21, 1
        %s199 = scalar_select %p198, %s21, 1
        %s200 = scalar_lea.vmem %s1, %s199
        %p201 = pneg %p68
        %p202 = pneg %p65
        %p203 = pneg %p89
        %p204 = pneg %p86
        %p205 = pneg %p115
        %p206 = pneg %p112
        %s207 = sand.u32 %s102, 1
        %s208 = scalar_lea.sflag [#allocation4], %s207
        %s209 = sand.u32 %s102, 1
        %s210 = smul.addr %s209, 8
        %s211 = scalar_lea.vmem [#allocation7], %s210
        %p212 = scmp.lt.s32.totalorder %s21, 1
        %s213 = scalar_select %p212, %s21, 1
        %s214 = scalar_lea.vmem %s1, %s213
        %v215 = vld [vmem:[%s182] sm:$0xff]
        %v216 = vld [vmem:[#allocation5] sm:$0xff]
        %v217 = vld [vmem:[#allocation5 + $0x8] sm:$0xff]
        %v218 = vld [vmem:[#allocation5 + $0x10] sm:$0xff]
        %v219 = vld [vmem:[#allocation5 + $0x18] sm:$0xff]
        %v220 = vld [vmem:[%s214] sm:$0x1]
        %v221 = vsub.s32 %v220, 1
        %vm222 = vcmask 261120
        %v224 = vsel %vm222, %v215, 0
        %v227 = vsel %vm222, %v216, 0
        %v230 = vsel %vm222, %v217, 0
        %v233 = vsel %vm222, %v218, 0
        %v236 = vsel %vm222, %v219, 0
        %238 = vmatprep.subr.mxu0 0.0
        %239 = vmatpush1.xpose.msra.mxu0 0.0
        %240 = vmatprep.subr.mxu0 0.0
        %241 = vmatpush1.xpose.msra.mxu0 0.0
        %242 = vmatprep.subr.mxu0 0.0
        %243 = vmatpush1.xpose.msra.mxu0 0.0
        %244 = vmatprep.subr.mxu0 0.0
        %245 = vmatpush1.xpose.msra.mxu0 0.0
        %246 = vmatprep.subr.mxu0 0.0
        %247 = vmatpush1.xpose.msra.mxu0 0.0
        %248 = vmatprep.subr.mxu0 0.0
        %249 = vmatpush1.xpose.msra.mxu0 0.0
        %250 = vmatprep.subr.mxu0 0.0
        %251 = vmatpush1.xpose.msra.mxu0 0.0
        %252 = vmatprep.subr.mxu0 0.0
        %253 = vmatpush1.xpose.msra.mxu0 0.0
        %254 = vmatprep.subr.mxu0 0.0
        %255 = vmatpush1.xpose.msra.mxu0 0.0
        %256 = vmatprep.subr.mxu0 0.0
        %257 = vmatpush1.xpose.msra.mxu0 0.0
        %258 = vmatprep.subr.mxu0 0.0
        %259 = vmatpush1.xpose.msra.mxu0 0.0
        %260 = vmatprep.subr.mxu0 0.0
        %261 = vmatpush1.xpose.msra.mxu0 0.0
        %262 = vmatprep.subr.mxu0 0.0
        %263 = vmatpush1.xpose.msra.mxu0 %v236
        %264 = vmatprep.subr.mxu0 0.0
        %265 = vmatpush1.xpose.msra.mxu0 %v233
        %266 = vmatprep.subr.mxu0 0.0
        %267 = vmatpush1.xpose.msra.mxu0 %v230
        %268 = vmatprep.subr.mxu0 0.0
        %269 = vmatpush1.xpose.msra.mxu0 %v227
        %270 = vmatprep.subr.mxu0 0.0
        %271 = vmatpush2.xpose.msra.mxu0 0.0
        %272 = vmatprep.subr.mxu0 0.0
        %273 = vmatpush2.xpose.msra.mxu0 0.0
        %274 = vmatprep.subr.mxu0 0.0
        %275 = vmatpush2.xpose.msra.mxu0 0.0
        %276 = vmatprep.subr.mxu0 0.0
        %277 = vmatpush2.xpose.msra.mxu0 0.0
        %278 = vmatprep.subr.mxu0 0.0
        %279 = vmatpush2.xpose.msra.mxu0 0.0
        %280 = vmatprep.subr.mxu0 0.0
        %281 = vmatpush2.xpose.msra.mxu0 0.0
        %282 = vmatprep.subr.mxu0 0.0
        %283 = vmatpush2.xpose.msra.mxu0 0.0
        %284 = vmatprep.subr.mxu0 0.0
        %285 = vmatpush2.xpose.msra.mxu0 0.0
        %286 = vmatprep.subr.mxu0 0.0
        %287 = vmatpush2.xpose.msra.mxu0 0.0
        %288 = vmatprep.subr.mxu0 0.0
        %289 = vmatpush2.xpose.msra.mxu0 0.0
        %290 = vmatprep.subr.mxu0 0.0
        %291 = vmatpush2.xpose.msra.mxu0 0.0
        %292 = vmatprep.subr.mxu0 0.0
        %293 = vmatpush2.xpose.msra.mxu0 0.0
        %294 = vmatprep.subr.mxu0 0.0
        %295 = vmatpush2.xpose.msra.mxu0 0.0
        %296 = vmatprep.subr.mxu0 0.0
        %297 = vmatpush2.xpose.msra.mxu0 0.0
        %298 = vmatprep.subr.mxu0 0.0
        %299 = vmatpush2.xpose.msra.mxu0 0.0
        %300 = vmatprep.subr.mxu0 0.0
        %301 = vmatpush2.xpose.msra.mxu0 0.0
        %302 = vmatprep.mubr.f32.mxu0 0.0
        %303 = vmatmul.mubr.f32.gmra.mxu0 %v224
        %v304 = vpop.f32.mrf.mxu0
        %v305 = vadd.f32 0.0, %v304
        %v306 = vpop.f32.mrf.mxu0
        %307 = vdwg.mxu0
        %v309 = vsel %vm222, %v305, 0
        %311 = vmatprep.subr.mxu0 0.0
        %312 = vmatpush1.xpose.msra.mxu0 0.0
        %313 = vmatprep.subr.mxu0 0.0
        %314 = vmatpush1.xpose.msra.mxu0 0.0
        %315 = vmatprep.subr.mxu0 0.0
        %316 = vmatpush1.xpose.msra.mxu0 0.0
        %317 = vmatprep.subr.mxu0 0.0
        %318 = vmatpush1.xpose.msra.mxu0 0.0
        %319 = vmatprep.subr.mxu0 0.0
        %320 = vmatpush1.xpose.msra.mxu0 0.0
        %321 = vmatprep.subr.mxu0 0.0
        %322 = vmatpush1.xpose.msra.mxu0 0.0
        %323 = vmatprep.subr.mxu0 0.0
        %324 = vmatpush1.xpose.msra.mxu0 0.0
        %325 = vmatprep.subr.mxu0 0.0
        %326 = vmatpush1.xpose.msra.mxu0 0.0
        %327 = vmatprep.subr.mxu0 0.0
        %328 = vmatpush1.xpose.msra.mxu0 0.0
        %329 = vmatprep.subr.mxu0 0.0
        %330 = vmatpush1.xpose.msra.mxu0 0.0
        %331 = vmatprep.subr.mxu0 0.0
        %332 = vmatpush1.xpose.msra.mxu0 0.0
        %333 = vmatprep.subr.mxu0 0.0
        %334 = vmatpush1.xpose.msra.mxu0 0.0
        %335 = vmatprep.subr.mxu0 0.0
        %336 = vmatpush1.xpose.msra.mxu0 0.0
        %337 = vmatprep.subr.mxu0 0.0
        %338 = vmatpush1.xpose.msra.mxu0 0.0
        %339 = vmatprep.subr.mxu0 0.0
        %340 = vmatpush1.xpose.msra.mxu0 0.0
        %341 = vmatprep.subr.mxu0 0.0
        %342 = vmatpush1.xpose.msra.mxu0 %v309
        %343 = vmatprep.subr.mxu0 0.0
        %344 = vmatpush2.xpose.msra.mxu0 0.0
        %345 = vmatprep.subr.mxu0 0.0
        %346 = vmatpush2.xpose.msra.mxu0 0.0
        %347 = vmatprep.subr.mxu0 0.0
        %348 = vmatpush2.xpose.msra.mxu0 0.0
        %349 = vmatprep.subr.mxu0 0.0
        %350 = vmatpush2.xpose.msra.mxu0 0.0
        %351 = vmatprep.subr.mxu0 0.0
        %352 = vmatpush2.xpose.msra.mxu0 0.0
        %353 = vmatprep.subr.mxu0 0.0
        %354 = vmatpush2.xpose.msra.mxu0 0.0
        %355 = vmatprep.subr.mxu0 0.0
        %356 = vmatpush2.xpose.msra.mxu0 0.0
        %357 = vmatprep.subr.mxu0 0.0
        %358 = vmatpush2.xpose.msra.mxu0 0.0
        %359 = vmatprep.subr.mxu0 0.0
        %360 = vmatpush2.xpose.msra.mxu0 0.0
        %361 = vmatprep.subr.mxu0 0.0
        %362 = vmatpush2.xpose.msra.mxu0 0.0
        %363 = vmatprep.subr.mxu0 0.0
        %364 = vmatpush2.xpose.msra.mxu0 0.0
        %365 = vmatprep.subr.mxu0 0.0
        %366 = vmatpush2.xpose.msra.mxu0 0.0
        %367 = vmatprep.subr.mxu0 0.0
        %368 = vmatpush2.xpose.msra.mxu0 0.0
        %369 = vmatprep.subr.mxu0 0.0
        %370 = vmatpush2.xpose.msra.mxu0 0.0
        %371 = vmatprep.subr.mxu0 0.0
        %372 = vmatpush2.xpose.msra.mxu0 0.0
        %373 = vmatprep.subr.mxu0 0.0
        %374 = vmatpush2.xpose.msra.mxu0 0.0
        %375 = vmatprep.mubr.f32.mxu0 0.0
        %376 = vmatmul.mubr.f32.gmra.mxu0 %v224
        %v377 = vpop.f32.mrf.mxu0
        %v378 = vadd.f32 0.0, %v377
        %v379 = vpop.f32.mrf.mxu0
        %380 = vdwg.mxu0
        %v381 = vlaneseq
        %v382 = vshrl.u32 %v381, 7
        %v383 = vlaneseq
        %v384 = vand.u32 %v383, 127
        %v385 = vsub.s32 %v384, %v382
        %vm386 = vcmp.ge.s32.totalorder %v385, 4294967294
        %vm387 = vcmp.le.s32.totalorder %v385, 2
        %vm388 = vmand %vm386, %vm387
        %v389 = vlaneseq
        %v390 = vshrl.u32 %v389, 7
        %v391 = vsub.s32 0, %v390
        %v392 = vrot.slane %v221, %v391
        %vm393 = vcmp.le.s32.totalorder %v382, %v392
        %v394 = vsel %vm393, 1, 0
        %395 = vset.pattern.permute.xlu0 0
        %396 = vperm.xlu0 %395, %v394
        %v397 = vpop.permute.xlu0 %396
        %vm398 = vcmp.eq.s32.totalorder %v397, 1
        %vm399 = vmand %vm388, %vm398
        %400 = vset.pattern.permute.xlu0 0
        %401 = vperm.xlu0 %400, %v221
        %v402 = vpop.permute.xlu0 %401
        %v403 = vlaneseq
        %v404 = vshrl.u32 %v403, 7
        %v405 = vsub.s32 0, %v404
        %v406 = vrot.slane %v402, %v405
        %vm407 = vcmp.le.s32.totalorder %v384, %v406
        %v408 = vsel %vm407, 1, 0
        %vm409 = vcmp.eq.s32.totalorder %v408, 1
        %vm410 = vmand %vm399, %vm409
        %v411 = vsel %vm410, %v378, -1e+30
        %vm412 = vcmask 64512
        %v413 = vsel %vm412, %v411, -inf
        %414 = vmax.xlane.f32.xlu0 %v413
        %v415 = vpop.xlane.xlu0 %414
        %v416 = vsub.f32 %v411, %v415
        %v417 = vmul.f32 %v416, 1.442695
        %v418 = vpow.pop %v417
        %v419 = vsel %vm410, %v418, 0.0
        %v420 = vsel %vm412, %v419, 0.0
        %421 = vadd.xlane.f32.xlu0 %v420
        %v422 = vpop.xlane.xlu0 %421
        %v423 = vmax.f32 %v422, 1e-30
        %v424 = vrcp.pop %v423
        %v425 = vmul.f32 %v423, %v424
        %v426 = vsub.f32 2.0, %v425
        %v427 = vmul.f32 %v424, %v426
        %vm428 = vcmp.gt.f32.partialorder %v422, 0.0
        %v429 = vmul.f32 %v419, %v427
        %v430 = vsel %vm428, 1, 0
        %vm431 = vcmp.eq.s32.totalorder %v430, 1
        %v432 = vsel %vm431, %v429, 0.0
        %vm433 = vcmask 900096
        %434 = vst.msk [vmem:[%s211] sm:$0xff] %vm433, 0.0
        %435 = vst.msk [vmem:[%s211] sm:$0xff] %vm412, %v432
        %s436 = sand.u32 %s102, 1
        %s437 = scalar_lea.sflag [#allocation4], %s436
        %s438 = sand.u32 %s102, 1
        %s439 = smul.addr %s438, 8
        %s440 = scalar_lea.vmem [#allocation7], %s439
        // Predicated region
        $region41: #{tpu_custom_call.1} parent=31 // pred_check
          %p441 = pneg %p112
        $region42: #{tpu_custom_call.1} parent=31 // pred_check_branch
          %443 = sbr.rel (%p441) target = $region44
        $region43: #{tpu_custom_call.1} parent=31 // pred_region
          %s445 = ssub.s32 128, 128
          %446 = vsyncadd %s437, %s445
          %s447 = smul.addr %s21, 128
          %s448 = scalar_lea.hbm %s3, %s447
          %s450 = sshll.u32 %s440, 4
          %s451 = int_to_ptr.vmem [resolvable:$true] %s450
          %453 = dma.vmem_to_hbm [thread:$0]  %s451, 128, %s448, %s437
        $region44: #{tpu_custom_call.1} parent=31 // pred_fallthru
          _
      $region32: #{tpu_custom_call.1} parent=5 // pred_fallthru
        _
      %p454 = scmp.le.s32.totalorder 2, %s16
      // Predicated region
      $region45: #{tpu_custom_call.1} parent=5 // pred_check
        %p455 = pneg %p454
      $region46: #{tpu_custom_call.1} parent=5 // pred_check_branch
        %457 = sbr.rel (%p455) target = $region48
      $region47: #{tpu_custom_call.1} parent=5 // pred_region
        %s458 = ssub.s32 %s16, 2
        // Predicated region
        $region49: #{tpu_custom_call.1} parent=47 // pred_check
          %p459 = pneg %p118
        $region50: #{tpu_custom_call.1} parent=47 // pred_check_branch
          %461 = sbr.rel (%p459) target = $region52
        $region51: #{tpu_custom_call.1} parent=47 // pred_region
          %s462 = sand.u32 %s103, 1
          %s463 = scalar_lea.sflag [#allocation4], %s462
          %s464 = sand.u32 %s103, 1
          %s465 = smul.addr %s464, 8
          %s466 = scalar_lea.vmem [#allocation7], %s465
          %467 = dma.done %s463, 128
        $region52: #{tpu_custom_call.1} parent=47 // pred_fallthru
          _
      $region48: #{tpu_custom_call.1} parent=5 // pred_fallthru
        _
    $region6: #{tpu_custom_call.1} parent=1 // loop_footer
      %s20 = sadd.s32 1, %s16
    $region7: #{tpu_custom_call.1} parent=1 // loop_footer_branch
      %15 = sbr.rel target = $region3
    $region8: #{tpu_custom_call.1} parent=1 // loop_exit
      _
    %468 = vsyncpa [#allocation3], 1
    %s469 = scalar_lea.sflag [#allocation3], 1
    %470 = vsyncpa %s469, 1
    %471 = vsyncpa [#allocation6], 1
    %472 = vsyncpa [#allocation4], 1
    %s473 = scalar_lea.sflag [#allocation4], 1
    %474 = vsyncpa %s473, 1

</llo_original>
